<compile_context>
chip_gen: v5e
topology: v5e:2x2
jax: 0.10.0
libtpu: 0.0.40
codegen_flags: <defaults>
</compile_context>

<pallas_src>
import functools

import jax
import jax.numpy as jnp
from jax.experimental import pallas as pl
from jax.experimental.pallas import tpu as pltpu


def _round_up(x, m):
    return ((x + m - 1) // m) * m


def _vmem_limit_bytes():
    """Per-generation scoped-VMEM limit (v7x: 64 MiB physical, v5e/v6e: 128 MiB)."""
    try:
        cap = pltpu.get_tpu_info().vmem_capacity_bytes
    except Exception:
        cap = 64 * 1024 * 1024
    return int(min(cap // 2, 64 * 1024 * 1024))


def _choose_l_tile(C, O, K_fold, halo, l_needed, fold, vmem_limit):
    """Largest lane-dense tile that keeps the pipeline inside the VMEM budget."""
    # Bytes of VMEM per output lane held live by the pipeline:
    #   2 input blocks (current + halo neighbour) x 2 pipeline buffers x C x bf16
    # + 1 output block x 2 pipeline buffers x O x f32
    # + in-kernel slab (folded path) or f32 accumulator (per-tap path)
    per_lane = 2 * 2 * C * 2 + 2 * O * 4 + (K_fold if fold else O) * 4
    budget = max(vmem_limit // 2, 1 << 20)
    lt = (budget // per_lane) // 128 * 128
    lt = min(max(lt, 128), 8192)                  # per-step gains flatten past ~8k lanes
    lt = min(lt, _round_up(l_needed, 128))        # never bigger than the whole image
    lt = max(lt, _round_up(max(halo, 1), 128))    # halo must fit inside one neighbour tile
    return lt


def _conv_kernel(x_ref, xn_ref, w_ref, o_ref, *, KH, KW, W_pad, L_tile, fold):
    """Fused im2col + matmul for one (image, spatial-tile) grid step.

    x_ref  : (C, L_tile)  bf16  current flattened-input tile
    xn_ref : (C, L_tile)  bf16  right-neighbour tile (supplies the halo)
    w_ref  : (O, KH*KW*C) bf16 when folded, else (KH*KW, O, C) bf16
    o_ref  : (O, L_tile)  lane-dense output tile (input dtype)
    """
    # Stitch the current tile and its halo neighbour once (lane-aligned concat);
    # every shifted window is then a cheap static slice of this value.
    xcat = jnp.concatenate([x_ref[...], xn_ref[...]], axis=-1)     # (C, 2*L_tile)

    def window(off):                                               # stride-1 shifted window
        return xcat[:, off:off + L_tile]                           # (C, L_tile)

    if fold:
        # Small C: stack all taps into the contraction dim -> a single MXU dot.
        slab = jnp.concatenate(
            [window(kh * W_pad + kw) for kh in range(KH) for kw in range(KW)],
            axis=0)                                                # (KH*KW*C, L_tile)
        acc = jnp.dot(w_ref[...], slab, preferred_element_type=jnp.float32)
    else:
        # Large C: per-tap dots into one f32 accumulator (K = C is already MXU-deep).
        acc = jnp.zeros(o_ref.shape, jnp.float32)
        for kh in range(KH):
            for kw in range(KW):
                acc = acc + jnp.dot(w_ref[kh * KW + kw], window(kh * W_pad + kw),
                                    preferred_element_type=jnp.float32)
    o_ref[...] = acc.astype(o_ref.dtype)


def basic_conv2d(x_nchw, weight, stride, padding):
    """Equivalent of BasicConv2d.forward: conv2d(x, weight, stride, padding), no bias."""
    N, C, H, W = x_nchw.shape
    O, C2, KH, KW = weight.shape
    assert C == C2
    H_pad, W_pad = H + 2 * padding, W + 2 * padding
    assert KH <= H_pad and KW <= W_pad
    Ho = (H_pad - KH) // stride + 1
    Wo = (W_pad - KW) // stride + 1
    Ho1 = H_pad - KH + 1                        # stride-1 output height
    L_needed = Ho1 * W_pad                      # flat stride-1 output length
    halo = (KH - 1) * W_pad + (KW - 1)          # largest shifted-window offset

    fold = C < 128                              # fold taps into contraction for small C
    K_fold = KH * KW * C
    vmem_limit = _vmem_limit_bytes()
    L_tile = _choose_l_tile(C, O, K_fold, halo, L_needed, fold, vmem_limit)
    n_t = -(-L_needed // L_tile)                # spatial tiles per image
    L_padded = (n_t + 1) * L_tile               # +1 tile so halo block t+1 always exists

    # Zero-pad spatially (PyTorch zero padding), flatten spatial dims, cast the
    # activations to bf16 (MXU-native, halves DMA/VMEM), and zero-extend the tail
    # so every tile and its halo neighbour are in bounds.
    xp = jnp.pad(x_nchw, ((0, 0), (0, 0), (padding, padding), (padding, padding)))
    xf = xp.reshape(N, C, H_pad * W_pad).astype(jnp.bfloat16)
    xf = jnp.pad(xf, ((0, 0), (0, 0), (0, L_padded - H_pad * W_pad)))

    # Weight layout: every in-kernel dot is the native (M, K) x (K, N) form.
    if fold:
        # (O, C, KH, KW) -> (O, KH, KW, C) -> (O, KH*KW*C): matches slab row order.
        wt = jnp.transpose(weight, (0, 2, 3, 1)).reshape(O, K_fold)
        w_spec = pl.BlockSpec((O, K_fold), lambda n, t: (0, 0))
    else:
        # (O, C, KH, KW) -> (KH, KW, O, C) -> (KH*KW, O, C): one (O, C) slice per tap.
        wt = jnp.transpose(weight, (2, 3, 0, 1)).reshape(KH * KW, O, C)
        w_spec = pl.BlockSpec((KH * KW, O, C), lambda n, t: (0, 0, 0))
    wt = wt.astype(jnp.bfloat16)

    kernel = functools.partial(_conv_kernel, KH=KH, KW=KW, W_pad=W_pad,
                               L_tile=L_tile, fold=fold)

    flops = 2 * N * O * K_fold * n_t * L_tile
    bytes_accessed = int((2 * N * n_t * C * L_tile + O * K_fold) * 2
                         + N * n_t * O * L_tile * jnp.dtype(x_nchw.dtype).itemsize)

    out_wide = pl.pallas_call(
        kernel,
        out_shape=jax.ShapeDtypeStruct((N, O, n_t * L_tile), x_nchw.dtype),
        grid_spec=pltpu.PrefetchScalarGridSpec(
            num_scalar_prefetch=0,
            grid=(N, n_t),                      # (image, spatial tile)
            in_specs=[
                pl.BlockSpec((None, C, L_tile), lambda n, t: (n, 0, t)),       # current
                pl.BlockSpec((None, C, L_tile), lambda n, t: (n, 0, t + 1)),   # halo
                w_spec,
            ],
            out_specs=pl.BlockSpec((None, O, L_tile), lambda n, t: (n, 0, t)),
        ),
        compiler_params=pltpu.CompilerParams(
            dimension_semantics=("parallel", "parallel"),
            vmem_limit_bytes=vmem_limit,
        ),
        cost_estimate=pl.CostEstimate(
            flops=flops, transcendentals=0, bytes_accessed=bytes_accessed),
    )(xf, xf, wt)

    # Un-flatten the padded-width stride-1 coordinates; drop wrap-around columns
    # and stride-skipped rows/cols.  Output is already NCHW-ordered.
    out4 = out_wide[:, :, :Ho1 * W_pad].reshape(N, O, Ho1, W_pad)
    y = out4[:, :, 0:(Ho - 1) * stride + 1:stride, 0:(Wo - 1) * stride + 1:stride]
    return y


if __name__ == "__main__":
    # BasicConv2d(in_channels=4, out_channels=8, kernel_size=3, stride=1, padding=1)
    in_channels, out_channels, kernel_size, stride, padding = 4, 8, 3, 1, 1
    N, H, W = 2, 16, 16

    key = jax.random.PRNGKey(0)
    kx, kw = jax.random.split(key)
    x = jax.random.normal(kx, (N, in_channels, H, W), dtype=jnp.float32)
    weight = 0.1 * jax.random.normal(
        kw, (out_channels, in_channels, kernel_size, kernel_size), dtype=jnp.float32)

    conv = jax.jit(functools.partial(basic_conv2d, stride=stride, padding=padding))
    y = jax.block_until_ready(conv(x, weight))

    # Reference: XLA conv on the same bf16-rounded operands the kernel feeds the
    # MXU (f32 accumulation on both sides), so tolerances stay tight.
    xb = x.astype(jnp.bfloat16).astype(jnp.float32)
    wb = weight.astype(jnp.bfloat16).astype(jnp.float32)
    y_ref = jax.lax.conv_general_dilated(
        xb, wb,
        window_strides=(stride, stride),
        padding=[(padding, padding), (padding, padding)],
        dimension_numbers=("NCHW", "OIHW", "NCHW"),
    )
    assert y.shape == (N, out_channels, H, W)
    assert jnp.allclose(y, y_ref, rtol=1e-2, atol=1e-2), \
        float(jnp.max(jnp.abs(y - y_ref)))

    print("KERNEL_OK")
</pallas_src>

<mosaic_0001>
module attributes {stable_mosaic.version = 11 : i64} {
  func.func @_conv_kernel(%arg0: i32, %arg1: i32, %arg2: memref<1x4x384xbf16, #tpu.memory_space<vmem>>, %arg3: memref<1x4x384xbf16, #tpu.memory_space<vmem>>, %arg4: memref<8x36xbf16, #tpu.memory_space<vmem>>, %arg5: memref<1x8x384xf32, #tpu.memory_space<vmem>>) attributes {dimension_semantics = [#tpu.dimension_semantics<parallel>, #tpu.dimension_semantics<parallel>], iteration_bounds = array<i64: 2, 1>, scalar_prefetch = 0 : i64, scratch_operands = 0 : i64, tpu.core_type = #tpu.core_type<tc>, window_params = [{transform_indices = @transform_0, window_bounds = array<i64: 1, 4, 384>}, {transform_indices = @transform_1, window_bounds = array<i64: 1, 4, 384>}, {pipeline_mode = #tpu.pipeline_mode<synchronous>, transform_indices = @transform_2, window_bounds = array<i64: 8, 36>}, {transform_indices = @transform_3, window_bounds = array<i64: 1, 8, 384>}]} {
    %c0 = arith.constant 0 : index
    %c0_0 = arith.constant 0 : index
    %c0_1 = arith.constant 0 : index
    %0 = vector.load %arg2[%c0, %c0_0, %c0_1] : memref<1x4x384xbf16, #tpu.memory_space<vmem>>, vector<1x4x384xbf16>
    %1 = vector.shape_cast %0 : vector<1x4x384xbf16> to vector<4x384xbf16>
    %c0_2 = arith.constant 0 : index
    %c0_3 = arith.constant 0 : index
    %c0_4 = arith.constant 0 : index
    %2 = vector.load %arg3[%c0_2, %c0_3, %c0_4] : memref<1x4x384xbf16, #tpu.memory_space<vmem>>, vector<1x4x384xbf16>
    %3 = vector.shape_cast %2 : vector<1x4x384xbf16> to vector<4x384xbf16>
    %4 = tpu.concatenate %1, %3 in 1 : vector<4x384xbf16>, vector<4x384xbf16> -> vector<4x768xbf16>
    %5 = vector.extract_strided_slice %4 {offsets = [0, 0], sizes = [4, 384], strides = [1, 1]} : vector<4x768xbf16> to vector<4x384xbf16>
    %6 = vector.extract_strided_slice %4 {offsets = [0, 1], sizes = [4, 384], strides = [1, 1]} : vector<4x768xbf16> to vector<4x384xbf16>
    %7 = vector.extract_strided_slice %4 {offsets = [0, 2], sizes = [4, 384], strides = [1, 1]} : vector<4x768xbf16> to vector<4x384xbf16>
    %8 = vector.extract_strided_slice %4 {offsets = [0, 18], sizes = [4, 384], strides = [1, 1]} : vector<4x768xbf16> to vector<4x384xbf16>
    %9 = vector.extract_strided_slice %4 {offsets = [0, 19], sizes = [4, 384], strides = [1, 1]} : vector<4x768xbf16> to vector<4x384xbf16>
    %10 = vector.extract_strided_slice %4 {offsets = [0, 20], sizes = [4, 384], strides = [1, 1]} : vector<4x768xbf16> to vector<4x384xbf16>
    %11 = vector.extract_strided_slice %4 {offsets = [0, 36], sizes = [4, 384], strides = [1, 1]} : vector<4x768xbf16> to vector<4x384xbf16>
    %12 = vector.extract_strided_slice %4 {offsets = [0, 37], sizes = [4, 384], strides = [1, 1]} : vector<4x768xbf16> to vector<4x384xbf16>
    %13 = vector.extract_strided_slice %4 {offsets = [0, 38], sizes = [4, 384], strides = [1, 1]} : vector<4x768xbf16> to vector<4x384xbf16>
    %14 = tpu.concatenate %5, %6, %7, %8, %9, %10, %11, %12, %13 in 0 : vector<4x384xbf16>, vector<4x384xbf16>, vector<4x384xbf16>, vector<4x384xbf16>, vector<4x384xbf16>, vector<4x384xbf16>, vector<4x384xbf16>, vector<4x384xbf16>, vector<4x384xbf16> -> vector<36x384xbf16>
    %c0_5 = arith.constant 0 : index
    %c0_6 = arith.constant 0 : index
    %15 = vector.load %arg4[%c0_5, %c0_6] : memref<8x36xbf16, #tpu.memory_space<vmem>>, vector<8x36xbf16>
    %cst = arith.constant dense<0.000000e+00> : vector<8x384xf32>
    %16 = tpu.matmul %15, %14, %cst {dimension_numbers = #tpu.dot_dimension_numbers<[1], [0], [0], [1], [0, 0, 1, 1], [], []>} : vector<8x36xbf16>, vector<36x384xbf16>, vector<8x384xf32> -> vector<8x384xf32>
    %c0_7 = arith.constant 0 : index
    %c0_8 = arith.constant 0 : index
    %c0_9 = arith.constant 0 : index
    %17 = vector.load %arg5[%c0_7, %c0_8, %c0_9] : memref<1x8x384xf32, #tpu.memory_space<vmem>>, vector<1x8x384xf32>
    %18 = vector.shape_cast %17 : vector<1x8x384xf32> to vector<8x384xf32>
    %19 = vector.shape_cast %16 : vector<8x384xf32> to vector<1x8x384xf32>
    tpu.vector_store %arg5[%c0_7, %c0_8, %c0_9], %19 {strides = array<i32>} : memref<1x8x384xf32, #tpu.memory_space<vmem>>, vector<1x8x384xf32>,
    return
  }
  func.func @transform_0(%arg0: i32, %arg1: i32) -> (i32, i32, i32) {
    %c0_i32 = arith.constant 0 : i32
    %c0_i32_0 = arith.constant 0 : i32
    return %arg0, %c0_i32, %arg1 : i32, i32, i32
  }
  func.func @transform_1(%arg0: i32, %arg1: i32) -> (i32, i32, i32) {
    %c1_i32 = arith.constant 1 : i32
    %0 = arith.addi %arg1, %c1_i32 : i32
    %c0_i32 = arith.constant 0 : i32
    %c0_i32_0 = arith.constant 0 : i32
    return %arg0, %c0_i32, %0 : i32, i32, i32
  }
  func.func @transform_2(%arg0: i32, %arg1: i32) -> (i32, i32) {
    %c0_i32 = arith.constant 0 : i32
    %c0_i32_0 = arith.constant 0 : i32
    %c0_i32_1 = arith.constant 0 : i32
    return %c0_i32, %c0_i32_0 : i32, i32
  }
  func.func @transform_3(%arg0: i32, %arg1: i32) -> (i32, i32, i32) {
    %c0_i32 = arith.constant 0 : i32
    %c0_i32_0 = arith.constant 0 : i32
    return %arg0, %c0_i32, %arg1 : i32, i32, i32
  }
}

</mosaic_0001>

<llo_original>
// kernel: basic_conv2d.1
$region0: #{basic_conv2d.1}
  #allocation0 [shape = 'u32[]', space=smem, size = 0x4, offset = 0x4, fixed_abs, tag = 'smem constant byte address 0x4 - core index']
  #allocation1 [shape = 'u32[72,128]{1,0:T(1,128)}', space=vmem, size = 0x9000, scoped, tag = 'internal scratch']
  %s0 = inlined_call_operand.vmem [shape: bf16[2,4,768], index: 0, kind: input, shape index: {}, may-alias: {0,1}]
  %s1 = inlined_call_operand.vmem [shape: bf16[2,4,768], index: 1, kind: input, shape index: {}, may-alias: {0,1}]
  %s2 = inlined_call_operand.vmem [shape: bf16[8,36], index: 2, kind: input, shape index: {}]
  %s3 = inlined_call_operand.vmem [shape: f32[2,8,384], index: 3, kind: output, shape index: {}]
  %s4 = sld [smem:[#allocation0]]
  $region45: #{basic_conv2d.1} parent=0
    _
  %s6 = ssub.s32 1, %s4
  %s7 = scalar_select 0, %s6, %s4
  loop: start=0, step=1, limit=4
  $region2: #{basic_conv2d.1} parent=0 // loop_pre_header
    _
  $region3: #{basic_conv2d.1} parent=0 // loop_header
    %s9 = sphi 0, %s13
    %p10 = scmp.ge.s32.totalorder %s9, 4
    %s16 = sphi 0, %s28
    %s17 = sphi 0, %s24
    %s18 = sphi 0, %s16
    %s19 = sphi 0, %s17
    %s20 = sphi 0, %s18
    %s21 = sphi 0, %s19
    %s33 = sphi 0, %s35
    %s36 = sphi 0, %s33
    %s37 = sphi 0, %s36
    %s53 = sphi 0, %s37
    %s63 = sphi 0, %s65
    %s66 = sphi 0, %s63
    %s67 = sphi 0, %s66
    %s83 = sphi 0, %s67
    %s87 = sphi 0, %s87
    %s89 = sphi 0, %s87
    %s90 = sphi 0, %s89
    %s104 = sphi 0, %s90
    %s112 = sphi 0, %s114
    %s115 = sphi 0, %s112
    %s116 = sphi 0, %s115
    %s132 = sphi 0, %s116
  $region4: #{basic_conv2d.1} parent=0 // loop_header_branch
    %12 = sbr.rel (%p10) target = $region8
  $region5: #{basic_conv2d.1} parent=0 // loop_body
    %s14 = ssub.s32 %s9, 1
    %s15 = ssub.s32 %s9, 2
    %s22 = sadd.s32 1, %s17
    %p23 = scmp.ge.s32.totalorder %s22, 1
    %s24 = scalar_select %p23, 0, %s22
    %s25 = sadd.s32 1, %s16
    %s26 = scalar_select %p23, %s25, %s16
    %p27 = scmp.ge.s32.totalorder %s26, 2
    %s28 = scalar_select %p27, 0, %s26
    %s29 = ssub.s32 %s16, %s28
    %s30 = ssub.s32 %s17, %s24
    %s31 = sor.u32 %s29, %s30
    %p32 = scmp.eq.s32.totalorder %s31, 0
    %s34 = sadd.s32 %s33, 1
    %s35 = scalar_select %p32, %s33, %s34
    %p38 = pneg %p32
    %p39 = scmp.eq.s32.totalorder %s9, 1
    %p40 = por %p38, %p39
    %p41 = scmp.ne.s32.totalorder %s33, %s36
    %p42 = scmp.eq.s32.totalorder %s9, 0
    %p43 = por %p41, %p42
    %p44 = scmp.ne.s32.totalorder %s33, %s36
    %p45 = scmp.eq.s32.totalorder %s14, 1
    %p46 = por %p44, %p45
    %p47 = scmp.ne.s32.totalorder %s36, %s37
    %p48 = scmp.eq.s32.totalorder %s14, 0
    %p49 = por %p47, %p48
    %p50 = scmp.ne.s32.totalorder %s36, %s37
    %p51 = scmp.eq.s32.totalorder %s15, 1
    %p52 = por %p50, %p51
    %p54 = scmp.ne.s32.totalorder %s37, %s53
    %p55 = scmp.eq.s32.totalorder %s15, 0
    %p56 = por %p54, %p55
    %s57 = sadd.s32 %s17, 1
    %s58 = sadd.s32 %s24, 1
    %s59 = ssub.s32 %s16, %s28
    %s60 = ssub.s32 %s57, %s58
    %s61 = sor.u32 %s59, %s60
    %p62 = scmp.eq.s32.totalorder %s61, 0
    %s64 = sadd.s32 %s63, 1
    %s65 = scalar_select %p62, %s63, %s64
    %p68 = pneg %p62
    %p69 = scmp.eq.s32.totalorder %s9, 1
    %p70 = por %p68, %p69
    %p71 = scmp.ne.s32.totalorder %s63, %s66
    %p72 = scmp.eq.s32.totalorder %s9, 0
    %p73 = por %p71, %p72
    %p74 = scmp.ne.s32.totalorder %s63, %s66
    %p75 = scmp.eq.s32.totalorder %s14, 1
    %p76 = por %p74, %p75
    %p77 = scmp.ne.s32.totalorder %s66, %s67
    %p78 = scmp.eq.s32.totalorder %s14, 0
    %p79 = por %p77, %p78
    %p80 = scmp.ne.s32.totalorder %s66, %s67
    %p81 = scmp.eq.s32.totalorder %s15, 1
    %p82 = por %p80, %p81
    %p84 = scmp.ne.s32.totalorder %s67, %s83
    %p85 = scmp.eq.s32.totalorder %s15, 0
    %p86 = por %p84, %p85
    %s88 = sadd.s32 %s87, 1
    %p91 = scmp.eq.s32.totalorder %s9, 1
    %p92 = scmp.ne.s32.totalorder %s87, %s89
    %p93 = scmp.eq.s32.totalorder %s9, 0
    %p94 = por %p92, %p93
    %p95 = scmp.ne.s32.totalorder %s87, %s89
    %p96 = scmp.eq.s32.totalorder %s14, 1
    %p97 = por %p95, %p96
    %p98 = scmp.ne.s32.totalorder %s89, %s90
    %p99 = scmp.eq.s32.totalorder %s14, 0
    %p100 = por %p98, %p99
    %p101 = scmp.ne.s32.totalorder %s89, %s90
    %p102 = scmp.eq.s32.totalorder %s15, 1
    %p103 = por %p101, %p102
    %p105 = scmp.ne.s32.totalorder %s90, %s104
    %p106 = scmp.eq.s32.totalorder %s15, 0
    %p107 = por %p105, %p106
    %s108 = ssub.s32 %s16, %s28
    %s109 = ssub.s32 %s17, %s24
    %s110 = sor.u32 %s108, %s109
    %p111 = scmp.eq.s32.totalorder %s110, 0
    %s113 = sadd.s32 %s112, 1
    %s114 = scalar_select %p111, %s112, %s113
    %p117 = pneg %p111
    %p118 = scmp.eq.s32.totalorder %s9, 1
    %p119 = por %p117, %p118
    %p120 = scmp.ne.s32.totalorder %s112, %s115
    %p121 = scmp.eq.s32.totalorder %s9, 0
    %p122 = por %p120, %p121
    %p123 = scmp.ne.s32.totalorder %s112, %s115
    %p124 = scmp.eq.s32.totalorder %s14, 1
    %p125 = por %p123, %p124
    %p126 = scmp.ne.s32.totalorder %s115, %s116
    %p127 = scmp.eq.s32.totalorder %s14, 0
    %p128 = por %p126, %p127
    %p129 = scmp.ne.s32.totalorder %s115, %s116
    %p130 = scmp.eq.s32.totalorder %s15, 1
    %p131 = por %p129, %p130
    %p133 = scmp.ne.s32.totalorder %s116, %s132
    %p134 = scmp.eq.s32.totalorder %s15, 0
    %p135 = por %p133, %p134
    %p136 = scmp.le.s32.totalorder 1, %s9
    %p137 = scmp.lt.s32.totalorder %s9, 3
    %p138 = pnand %p136, %p137
    %p139 = pneg %p138
    // Predicated region
    $region9: #{basic_conv2d.1} parent=5 // pred_check
      _
    $region10: #{basic_conv2d.1} parent=5 // pred_check_branch
      %141 = sbr.rel (%p138) target = $region12
    $region11: #{basic_conv2d.1} parent=5 // pred_region
      %s142 = ssub.s32 %s9, 1
      // Predicated region
      $region13: #{basic_conv2d.1} parent=11 // pred_check
        %p143 = pneg %p100
      $region14: #{basic_conv2d.1} parent=11 // pred_check_branch
        %145 = sbr.rel (%p143) target = $region16
      $region15: #{basic_conv2d.1} parent=11 // pred_region
        _
      $region16: #{basic_conv2d.1} parent=11 // pred_fallthru
        _
    $region12: #{basic_conv2d.1} parent=5 // pred_fallthru
      _
    %p146 = scmp.lt.s32.totalorder %s9, 2
    // Predicated region
    $region17: #{basic_conv2d.1} parent=5 // pred_check
      %p147 = pneg %p146
    $region18: #{basic_conv2d.1} parent=5 // pred_check_branch
      %149 = sbr.rel (%p147) target = $region20
    $region19: #{basic_conv2d.1} parent=5 // pred_region
      // Predicated region
      $region21: #{basic_conv2d.1} parent=19 // pred_check
        %p150 = pneg %p43
      $region22: #{basic_conv2d.1} parent=19 // pred_check_branch
        %152 = sbr.rel (%p150) target = $region24
      $region23: #{basic_conv2d.1} parent=19 // pred_region
        %s153 = smul.u32 3, %s17
        %p154 = scmp.lt.s32.totalorder %s16, 1
        %s155 = scalar_select %p154, %s16, 1
        %p156 = scmp.lt.s32.totalorder %s153, 5
        %s157 = scalar_select %p156, %s153, 5
        %s158 = smul.addr %s155, 6
        %s159 = sadd.s32 %s157, %s158
        %s160 = smul.addr %s159, 2
        %s161 = scalar_lea.vmem %s0, %s160
        %s162 = smul.u32 3, %s17
      $region24: #{basic_conv2d.1} parent=19 // pred_fallthru
        _
      // Predicated region
      $region25: #{basic_conv2d.1} parent=19 // pred_check
        %p163 = pneg %p73
      $region26: #{basic_conv2d.1} parent=19 // pred_check_branch
        %165 = sbr.rel (%p163) target = $region28
      $region27: #{basic_conv2d.1} parent=19 // pred_region
        %s166 = sadd.s32 %s17, 1
        %s167 = smul.u32 3, %s166
        %p168 = scmp.lt.s32.totalorder %s16, 1
        %s169 = scalar_select %p168, %s16, 1
        %p170 = scmp.lt.s32.totalorder %s167, 5
        %s171 = scalar_select %p170, %s167, 5
        %s172 = smul.addr %s169, 6
        %s173 = sadd.s32 %s171, %s172
        %s174 = smul.addr %s173, 2
        %s175 = scalar_lea.vmem %s1, %s174
        %s176 = sadd.s32 %s17, 1
        %s177 = smul.u32 3, %s176
      $region28: #{basic_conv2d.1} parent=19 // pred_fallthru
        _
    $region20: #{basic_conv2d.1} parent=5 // pred_fallthru
      _
    %p178 = scmp.le.s32.totalorder 1, %s9
    %p179 = scmp.lt.s32.totalorder %s9, 3
    %p180 = pnand %p178, %p179
    %p181 = pneg %p180
    // Predicated region
    $region29: #{basic_conv2d.1} parent=5 // pred_check
      _
    $region30: #{basic_conv2d.1} parent=5 // pred_check_branch
      %183 = sbr.rel (%p180) target = $region32
    $region31: #{basic_conv2d.1} parent=5 // pred_region
      %s184 = ssub.s32 %s9, 1
      %s185 = smul.u32 3, %s19
      %p186 = scmp.lt.s32.totalorder %s18, 1
      %s187 = scalar_select %p186, %s18, 1
      %p188 = scmp.lt.s32.totalorder %s185, 5
      %s189 = scalar_select %p188, %s185, 5
      %s190 = smul.addr %s187, 6
      %s191 = sadd.s32 %s189, %s190
      %s192 = smul.addr %s191, 2
      %s193 = scalar_lea.vmem %s0, %s192
      %p194 = pneg %p49
      %p195 = pneg %p46
      %s196 = sadd.s32 %s19, 1
      %s197 = smul.u32 3, %s196
      %p198 = scmp.lt.s32.totalorder %s18, 1
      %s199 = scalar_select %p198, %s18, 1
      %p200 = scmp.lt.s32.totalorder %s197, 5
      %s201 = scalar_select %p200, %s197, 5
      %s202 = smul.addr %s199, 6
      %s203 = sadd.s32 %s201, %s202
      %s204 = smul.addr %s203, 2
      %s205 = scalar_lea.vmem %s1, %s204
      %p206 = pneg %p79
      %p207 = pneg %p76
      %p208 = pneg %p100
      %p209 = pneg %p97
      %p210 = pneg %p128
      %p211 = pneg %p125
      %s212 = smul.u32 3, %s19
      %p213 = scmp.lt.s32.totalorder %s18, 1
      %s214 = scalar_select %p213, %s18, 1
      %p215 = scmp.lt.s32.totalorder %s212, 2
      %s216 = scalar_select %p215, %s212, 2
      %s217 = smul.addr %s214, 3
      %s218 = sadd.s32 %s216, %s217
      %s219 = smul.addr %s218, 8
      %s220 = scalar_lea.vmem %s3, %s219
      %s221 = smul.u32 3, %s19
      %p222 = scmp.lt.s32.totalorder %s18, 1
      %s223 = scalar_select %p222, %s18, 1
      %p224 = scmp.lt.s32.totalorder %s221, 5
      %s225 = scalar_select %p224, %s221, 5
      %s226 = smul.addr %s223, 6
      %s227 = sadd.s32 %s225, %s226
      %s228 = smul.addr %s227, 2
      %s229 = scalar_lea.vmem %s0, %s228
      %s230 = smul.u32 3, %s19
      %s231 = sadd.s32 %s19, 1
      %s232 = smul.u32 3, %s231
      %p233 = scmp.lt.s32.totalorder %s18, 1
      %s234 = scalar_select %p233, %s18, 1
      %p235 = scmp.lt.s32.totalorder %s232, 5
      %s236 = scalar_select %p235, %s232, 5
      %s237 = smul.addr %s234, 6
      %s238 = sadd.s32 %s236, %s237
      %s239 = smul.addr %s238, 2
      %s240 = scalar_lea.vmem %s1, %s239
      %s241 = sadd.s32 %s19, 1
      %s242 = smul.u32 3, %s241
      %s243 = smul.u32 3, %s19
      %p244 = scmp.lt.s32.totalorder %s18, 1
      %s245 = scalar_select %p244, %s18, 1
      %p246 = scmp.lt.s32.totalorder %s243, 2
      %s247 = scalar_select %p246, %s243, 2
      %s248 = smul.addr %s245, 3
      %s249 = sadd.s32 %s247, %s248
      %s250 = smul.addr %s249, 8
      %s251 = scalar_lea.vmem %s3, %s250
      %s252 = smul.u32 3, %s19
      %v254 = vld [vmem:[%s229] sm:$0x3f]
      %v255 = vld [vmem:[%s240] sm:$0x3f]
      %257 = vst [vmem:[#allocation1] ss:$4 sm:$0xff] %v254
      %v258 = vld.sshfl [vmem:[#allocation1] sm:$0xff pattern:$0x73625140]
      %v260 = vld.sshfl [vmem:[#allocation1 + $0x8] sm:$0xff pattern:$0x73625140]
      %v262 = vld.sshfl [vmem:[#allocation1 + $0x10] sm:$0xff pattern:$0x73625140]
      %265 = vst [vmem:[#allocation1] ss:$4 sm:$0xff] %v255
      %v266 = vld.sshfl [vmem:[#allocation1] sm:$0xff pattern:$0x73625140]
      %v268 = vrot.slane %v258, 6
      %v269 = vrot.slane %v260, 6
      %v270 = vrot.slane %v262, 6
      %v271 = vrot.slane %v266, 6
      %272 = vrot.lane.b32.xlu0 %v268, 127
      %v273 = vpop.permute.xlu0 %272
      %274 = vrot.lane.b32.xlu0 %v269, 127
      %v275 = vpop.permute.xlu0 %274
      %276 = vrot.lane.b32.xlu0 %v270, 127
      %v277 = vpop.permute.xlu0 %276
      %278 = vrot.lane.b32.xlu0 %v271, 127
      %v279 = vpop.permute.xlu0 %278
      %vm280 = vcmask 1039360
      %v281 = vsel %vm280, %v273, %v275
      %v282 = vsel %vm280, %v275, %v277
      %v283 = vsel %vm280, %v277, %v279
      %v284 = vrot.slane %v258, 4
      %v285 = vrot.slane %v260, 4
      %v286 = vrot.slane %v262, 4
      %v287 = vrot.slane %v266, 4
      %288 = vrot.lane.b32.xlu0 %v284, 126
      %v289 = vpop.permute.xlu0 %288
      %290 = vrot.lane.b32.xlu0 %v285, 126
      %v291 = vpop.permute.xlu0 %290
      %292 = vrot.lane.b32.xlu0 %v286, 126
      %v293 = vpop.permute.xlu0 %292
      %294 = vrot.lane.b32.xlu0 %v287, 126
      %v295 = vpop.permute.xlu0 %294
      %vm296 = vcmask 1031168
      %v297 = vsel %vm296, %v289, %v291
      %v298 = vsel %vm296, %v291, %v293
      %v299 = vsel %vm296, %v293, %v295
      %v300 = vrot.slane %v258, 2
      %v301 = vrot.slane %v260, 2
      %v302 = vrot.slane %v262, 2
      %v303 = vrot.slane %v266, 2
      %304 = vrot.lane.b32.xlu0 %v300, 110
      %v305 = vpop.permute.xlu0 %304
      %306 = vrot.lane.b32.xlu0 %v301, 110
      %v307 = vpop.permute.xlu0 %306
      %308 = vrot.lane.b32.xlu0 %v302, 110
      %v309 = vpop.permute.xlu0 %308
      %310 = vrot.lane.b32.xlu0 %v303, 110
      %v311 = vpop.permute.xlu0 %310
      %vm312 = vcmask 900096
      %v313 = vsel %vm312, %v305, %v307
      %v314 = vsel %vm312, %v307, %v309
      %v315 = vsel %vm312, %v309, %v311
      %316 = vrot.lane.b32.xlu0 %v258, 109
      %v317 = vpop.permute.xlu0 %316
      %318 = vrot.lane.b32.xlu0 %v260, 109
      %v319 = vpop.permute.xlu0 %318
      %320 = vrot.lane.b32.xlu0 %v262, 109
      %v321 = vpop.permute.xlu0 %320
      %322 = vrot.lane.b32.xlu0 %v266, 109
      %v323 = vpop.permute.xlu0 %322
      %vm324 = vcmask 891904
      %v325 = vsel %vm324, %v317, %v319
      %v326 = vsel %vm324, %v319, %v321
      %v327 = vsel %vm324, %v321, %v323
      %328 = vrot.lane.b32.xlu0 %v268, 108
      %v329 = vpop.permute.xlu0 %328
      %330 = vrot.lane.b32.xlu0 %v269, 108
      %v331 = vpop.permute.xlu0 %330
      %332 = vrot.lane.b32.xlu0 %v270, 108
      %v333 = vpop.permute.xlu0 %332
      %334 = vrot.lane.b32.xlu0 %v271, 108
      %v335 = vpop.permute.xlu0 %334
      %vm336 = vcmask 883712
      %v337 = vsel %vm336, %v329, %v331
      %v338 = vsel %vm336, %v331, %v333
      %v339 = vsel %vm336, %v333, %v335
      %340 = vrot.lane.b32.xlu0 %v284, 92
      %v341 = vpop.permute.xlu0 %340
      %342 = vrot.lane.b32.xlu0 %v285, 92
      %v343 = vpop.permute.xlu0 %342
      %344 = vrot.lane.b32.xlu0 %v286, 92
      %v345 = vpop.permute.xlu0 %344
      %346 = vrot.lane.b32.xlu0 %v287, 92
      %v347 = vpop.permute.xlu0 %346
      %vm348 = vcmask 752640
      %v349 = vsel %vm348, %v341, %v343
      %v350 = vsel %vm348, %v343, %v345
      %v351 = vsel %vm348, %v345, %v347
      %352 = vrot.lane.b32.xlu0 %v300, 91
      %v353 = vpop.permute.xlu0 %352
      %354 = vrot.lane.b32.xlu0 %v301, 91
      %v355 = vpop.permute.xlu0 %354
      %356 = vrot.lane.b32.xlu0 %v302, 91
      %v357 = vpop.permute.xlu0 %356
      %358 = vrot.lane.b32.xlu0 %v303, 91
      %v359 = vpop.permute.xlu0 %358
      %vm360 = vcmask 744448
      %v361 = vsel %vm360, %v353, %v355
      %v362 = vsel %vm360, %v355, %v357
      %v363 = vsel %vm360, %v357, %v359
      %364 = vrot.lane.b32.xlu0 %v258, 90
      %v365 = vpop.permute.xlu0 %364
      %366 = vrot.lane.b32.xlu0 %v260, 90
      %v367 = vpop.permute.xlu0 %366
      %368 = vrot.lane.b32.xlu0 %v262, 90
      %v369 = vpop.permute.xlu0 %368
      %370 = vrot.lane.b32.xlu0 %v266, 90
      %v371 = vpop.permute.xlu0 %370
      %vm372 = vcmask 736256
      %v373 = vsel %vm372, %v365, %v367
      %v374 = vsel %vm372, %v367, %v369
      %v375 = vsel %vm372, %v369, %v371
      %vm376 = vcmask 1041408
      %v378 = vsel %vm376, %v258, %v281
      %v380 = vsel %vm376, %v260, %v282
      %v382 = vsel %vm376, %v262, %v283
      %vm383 = vcmask 1043456
      %v385 = vsel %vm383, %v378, %v297
      %v387 = vsel %vm383, %v380, %v298
      %v389 = vsel %vm383, %v382, %v299
      %vm390 = vcmask 1045504
      %v392 = vsel %vm390, %v385, %v313
      %v395 = vsel %vm390, %v387, %v314
      %v398 = vsel %vm390, %v389, %v315
      %v402 = vsel %vm376, %v325, %v337
      %v405 = vsel %vm376, %v326, %v338
      %v408 = vsel %vm376, %v327, %v339
      %v410 = vsel %vm383, %v402, %v349
      %v412 = vsel %vm383, %v405, %v350
      %v414 = vsel %vm383, %v408, %v351
      %v416 = vsel %vm390, %v410, %v361
      %v419 = vsel %vm390, %v412, %v362
      %v422 = vsel %vm390, %v414, %v363
      %v424 = vld [vmem:[%s2] sm:$0xf]
      %vm425 = vcmask 293888
      %v427 = vsel %vm425, %v424, 0
      %v430 = vsel %vm376, %v373, 0
      %v433 = vsel %vm376, %v374, 0
      %v436 = vsel %vm376, %v375, 0
      %438 = vmatpush.bf16.msra.mxu0 0
      %439 = vmatpush.bf16.msra.mxu0 0
      %440 = vmatpush.bf16.msra.mxu0 0
      %441 = vmatpush.bf16.msra.mxu0 0
      %442 = vmatpush.bf16.msra.mxu0 0
      %443 = vmatpush.bf16.msra.mxu0 %v430
      %444 = vmatpush.bf16.msra.mxu0 %v416
      %445 = vmatpush.bf16.msra.mxu0 %v392
      %446 = vmatmul.bf16.gmra.mxu0 %v427
      %v447 = vpop.f32.mrf.mxu0
      %v448 = vadd.f32 0.0, %v447
      %v449 = vpop.f32.mrf.mxu0
      %450 = vdwg.mxu0
      %451 = vmatpush.bf16.msra.mxu0 0
      %452 = vmatpush.bf16.msra.mxu0 0
      %453 = vmatpush.bf16.msra.mxu0 0
      %454 = vmatpush.bf16.msra.mxu0 0
      %455 = vmatpush.bf16.msra.mxu0 0
      %456 = vmatpush.bf16.msra.mxu0 %v433
      %457 = vmatpush.bf16.msra.mxu0 %v419
      %458 = vmatpush.bf16.msra.mxu0 %v395
      %459 = vmatmul.bf16.gmra.mxu0 %v427
      %v460 = vpop.f32.mrf.mxu0
      %v461 = vadd.f32 0.0, %v460
      %v462 = vpop.f32.mrf.mxu0
      %463 = vdwg.mxu0
      %464 = vmatpush.bf16.msra.mxu0 0
      %465 = vmatpush.bf16.msra.mxu0 0
      %466 = vmatpush.bf16.msra.mxu0 0
      %467 = vmatpush.bf16.msra.mxu0 0
      %468 = vmatpush.bf16.msra.mxu0 0
      %469 = vmatpush.bf16.msra.mxu0 %v436
      %470 = vmatpush.bf16.msra.mxu0 %v422
      %471 = vmatpush.bf16.msra.mxu0 %v398
      %472 = vmatmul.bf16.gmra.mxu0 %v427
      %v473 = vpop.f32.mrf.mxu0
      %v474 = vadd.f32 0.0, %v473
      %v475 = vpop.f32.mrf.mxu0
      %476 = vdwg.mxu0
      %477 = vst [vmem:[%s251] sm:$0xff] %v448
      %478 = vst [vmem:[%s251 + $0x8] sm:$0xff] %v461
      %479 = vst [vmem:[%s251 + $0x10] sm:$0xff] %v474
      %s480 = smul.u32 3, %s19
      %p481 = scmp.lt.s32.totalorder %s18, 1
      %s482 = scalar_select %p481, %s18, 1
      %p483 = scmp.lt.s32.totalorder %s480, 2
      %s484 = scalar_select %p483, %s480, 2
      %s485 = smul.addr %s482, 3
      %s486 = sadd.s32 %s484, %s485
      %s487 = smul.addr %s486, 8
      %s488 = scalar_lea.vmem %s3, %s487
      // Predicated region
      $region33: #{basic_conv2d.1} parent=31 // pred_check
        %p489 = pneg %p125
      $region34: #{basic_conv2d.1} parent=31 // pred_check_branch
        %491 = sbr.rel (%p489) target = $region36
      $region35: #{basic_conv2d.1} parent=31 // pred_region
        %s492 = smul.u32 3, %s19
      $region36: #{basic_conv2d.1} parent=31 // pred_fallthru
        _
    $region32: #{basic_conv2d.1} parent=5 // pred_fallthru
      _
    %p493 = scmp.le.s32.totalorder 2, %s9
    // Predicated region
    $region37: #{basic_conv2d.1} parent=5 // pred_check
      %p494 = pneg %p493
    $region38: #{basic_conv2d.1} parent=5 // pred_check_branch
      %496 = sbr.rel (%p494) target = $region40
    $region39: #{basic_conv2d.1} parent=5 // pred_region
      %s497 = ssub.s32 %s9, 2
      // Predicated region
      $region41: #{basic_conv2d.1} parent=39 // pred_check
        %p498 = pneg %p131
      $region42: #{basic_conv2d.1} parent=39 // pred_check_branch
        %500 = sbr.rel (%p498) target = $region44
      $region43: #{basic_conv2d.1} parent=39 // pred_region
        %s501 = smul.u32 3, %s21
        %p502 = scmp.lt.s32.totalorder %s20, 1
        %s503 = scalar_select %p502, %s20, 1
        %p504 = scmp.lt.s32.totalorder %s501, 2
        %s505 = scalar_select %p504, %s501, 2
        %s506 = smul.addr %s503, 3
        %s507 = sadd.s32 %s505, %s506
        %s508 = smul.addr %s507, 8
        %s509 = scalar_lea.vmem %s3, %s508
      $region44: #{basic_conv2d.1} parent=39 // pred_fallthru
        _
    $region40: #{basic_conv2d.1} parent=5 // pred_fallthru
      _
  $region6: #{basic_conv2d.1} parent=0 // loop_footer
    %s13 = sadd.s32 1, %s9
  $region7: #{basic_conv2d.1} parent=0 // loop_footer_branch
    %8 = sbr.rel target = $region3
  $region8: #{basic_conv2d.1} parent=0 // loop_exit
    _

</llo_original>
